<compile_context>
chip_gen: v6e
topology: v6e:2x2x1
jax: 0.10.0
libtpu: 0.0.40
codegen_flags: <defaults>
</compile_context>

<pallas_src>
import functools

import jax
import jax.numpy as jnp
from jax.experimental import pallas as pl
from jax.experimental.pallas import tpu as pltpu


def _round_up(x, m):
    return (x + m - 1) // m * m


def classifier_kernel(x_ref, v_ref, g_ref, b_ref, o_ref, scale_ref):
    # x_ref: (TB, D)   v_ref: (TC, D)   g_ref/b_ref: (1, TC)
    # o_ref: (TB, TC)  scale_ref: (num_class_tiles, 1, TC) persistent VMEM scratch
    j = pl.program_id(0)  # class-tile index ("parallel")
    i = pl.program_id(1)  # batch-tile index ("arbitrary": sequential per class tile)

    @pl.when(i == 0)
    def _compute_scale():
        # Row-wise sum of squares of V, produced lane-major as (1, TC) on the MXU.
        v = v_ref[...].astype(jnp.float32)
        ones_row = jnp.ones((1, v.shape[1]), dtype=jnp.float32)
        sumsq = jax.lax.dot_general(
            ones_row, v * v,
            dimension_numbers=(((1,), (1,)), ((), ())),
            preferred_element_type=jnp.float32)                      # (1, TC)
        # rsqrt lands on the EUP; no VPU divide.
        scale_ref[j] = g_ref[...].astype(jnp.float32) * jax.lax.rsqrt(sumsq)

    # Main matmul: contract D of x with D of V (RHS row-major, no transpose), f32 acc.
    acc = jax.lax.dot_general(
        x_ref[...], v_ref[...],
        dimension_numbers=(((1,), (1,)), ((), ())),
        preferred_element_type=jnp.float32)                          # (TB, TC)

    out = acc * scale_ref[j] + b_ref[...].astype(jnp.float32)
    o_ref[...] = out.astype(o_ref.dtype)


@functools.partial(jax.jit, static_argnames=("tile_b", "tile_c", "compute_dtype"))
def classifier_layer(x, v, g, b, *, tile_b=256, tile_c=256, compute_dtype=None):
    """x: (..., D), v: (C, D), g: (C,) or (C,1), b: (C,) -> (..., C)."""
    orig_lead = x.shape[:-1]
    D = x.shape[-1]
    C = v.shape[0]
    g = g.reshape(-1)
    b = b.reshape(-1)

    x2 = x.reshape(-1, D)
    B = x2.shape[0]
    out_dtype = x.dtype
    op_dtype = x.dtype if compute_dtype is None else compute_dtype

    # Lane-dense class padding (multiple of 128); batch padded to the tile (multiple of 8).
    tc = _round_up(min(tile_c, _round_up(C, 128)), 128)
    c_pad = _round_up(C, tc)
    tb = _round_up(min(tile_b, _round_up(B, 8)), 8)
    b_padded = _round_up(B, tb)
    num_j = c_pad // tc
    num_i = b_padded // tb

    # Pad inputs. Padded V rows get a 1.0 in column 0 so their norm is finite; their
    # g/b entries are zero, so the padded output columns are exactly 0 and sliced off.
    xp = jnp.zeros((b_padded, D), op_dtype).at[:B, :].set(x2.astype(op_dtype))
    vp = (jnp.zeros((c_pad, D), op_dtype)
          .at[C:, 0].set(jnp.asarray(1.0, op_dtype))
          .at[:C, :].set(v.astype(op_dtype)))
    gp = jnp.zeros((1, c_pad), jnp.float32).at[0, :C].set(g.astype(jnp.float32))
    bp = jnp.zeros((1, c_pad), jnp.float32).at[0, :C].set(b.astype(jnp.float32))

    # Advisory cost estimate for the surrounding XLA schedule.
    itemsize = jnp.dtype(op_dtype).itemsize
    cost = pl.CostEstimate(
        flops=2 * b_padded * c_pad * D + 2 * c_pad * D,
        transcendentals=c_pad,
        bytes_accessed=(b_padded * D + c_pad * D) * itemsize
        + b_padded * c_pad * jnp.dtype(out_dtype).itemsize + 2 * c_pad * 4,
    )

    # Explicit VMEM budget: double-buffered x/V tiles + g/b/out tiles + scale scratch.
    tile_bytes = (itemsize * 2 * (tb * D + tc * D)
                  + 4 * 2 * (tb * tc + 2 * tc)
                  + 4 * num_j * tc)
    vmem_limit = int(min(64 * 2**20, max(32 * 2**20, 2 * tile_bytes)))

    out_padded = pl.pallas_call(
        classifier_kernel,
        out_shape=jax.ShapeDtypeStruct((b_padded, c_pad), out_dtype),
        grid_spec=pltpu.PrefetchScalarGridSpec(
            num_scalar_prefetch=0,
            grid=(num_j, num_i),
            in_specs=[
                pl.BlockSpec((tb, D), lambda j, i: (i, 0)),   # x tile
                pl.BlockSpec((tc, D), lambda j, i: (j, 0)),   # V tile (resident per j)
                pl.BlockSpec((1, tc), lambda j, i: (0, j)),   # g (lane-major)
                pl.BlockSpec((1, tc), lambda j, i: (0, j)),   # bias (lane-major)
            ],
            out_specs=pl.BlockSpec((tb, tc), lambda j, i: (i, j)),
            scratch_shapes=[pltpu.VMEM((num_j, 1, tc), jnp.float32)],
        ),
        compiler_params=pltpu.CompilerParams(
            dimension_semantics=("parallel", "arbitrary"),
            vmem_limit_bytes=vmem_limit,
        ),
        cost_estimate=cost,
    )(xp, vp, gp, bp)

    out = out_padded[:B, :C]
    return out.reshape(orig_lead + (C,))


if __name__ == "__main__":
    # Small shapes consistent with the module: batch=8, input_dim=32, classes=16
    B, D, C = 8, 32, 16
    key = jax.random.PRNGKey(0)
    kx, kv, kg, kb = jax.random.split(key, 4)

    x = jax.random.normal(kx, (B, D), dtype=jnp.float32)
    v = jax.random.normal(kv, (C, D), dtype=jnp.float32) * 0.1   # weight_v
    g = jax.random.uniform(kg, (C,), dtype=jnp.float32) + 0.5    # weight_g (per-row gain)
    b = jax.random.normal(kb, (C,), dtype=jnp.float32) * 0.01    # bias

    out = classifier_layer(x, v, g, b)
    out = jax.block_until_ready(out)

    # Pure-JAX reference (weight_norm dim=0 + linear; dropout = identity in eval).
    norm = jnp.sqrt(jnp.sum(v * v, axis=1, keepdims=True))
    w_eff = v * (g.reshape(C, 1) / norm)
    ref = x @ w_eff.T + b

    assert out.shape == (B, C)
    assert jnp.allclose(out, ref, atol=1e-4, rtol=1e-4), float(jnp.max(jnp.abs(out - ref)))

    print("KERNEL_OK")
</pallas_src>

<mosaic_0001>
module attributes {stable_mosaic.version = 11 : i64} {
  func.func @classifier_kernel(%arg0: i32, %arg1: i32, %arg2: memref<8x32xf32, #tpu.memory_space<vmem>>, %arg3: memref<128x32xf32, #tpu.memory_space<vmem>>, %arg4: memref<1x128xf32, #tpu.memory_space<vmem>>, %arg5: memref<1x128xf32, #tpu.memory_space<vmem>>, %arg6: memref<8x128xf32, #tpu.memory_space<vmem>>, %arg7: memref<1x1x128xf32, #tpu.memory_space<vmem>>) attributes {dimension_semantics = [#tpu.dimension_semantics<parallel>, #tpu.dimension_semantics<arbitrary>], iteration_bounds = array<i64: 1, 1>, scalar_prefetch = 0 : i64, scratch_operands = 1 : i64, tpu.core_type = #tpu.core_type<tc>, window_params = [{transform_indices = @transform_0, window_bounds = array<i64: 8, 32>}, {transform_indices = @transform_1, window_bounds = array<i64: 128, 32>}, {transform_indices = @transform_2, window_bounds = array<i64: 1, 128>}, {transform_indices = @transform_3, window_bounds = array<i64: 1, 128>}, {transform_indices = @transform_4, window_bounds = array<i64: 8, 128>}]} {
    %c0_i32 = arith.constant 0 : i32
    %0 = arith.cmpi eq, %arg1, %c0_i32 : i32
    %1 = arith.extui %0 : i1 to i32
    %c0_i32_0 = arith.constant 0 : i32
    %2 = arith.cmpi ne, %1, %c0_i32_0 : i32
    scf.if %2 {
      %c0_10 = arith.constant 0 : index
      %c0_11 = arith.constant 0 : index
      %15 = vector.load %arg3[%c0_10, %c0_11] : memref<128x32xf32, #tpu.memory_space<vmem>>, vector<128x32xf32>
      %cst_12 = arith.constant 1.000000e+00 : f32
      %16 = vector.broadcast %cst_12 : f32 to vector<1x32xf32>
      %17 = arith.mulf %15, %15 : vector<128x32xf32>
      %cst_13 = arith.constant dense<0.000000e+00> : vector<1x128xf32>
      %18 = tpu.matmul %16, %17, %cst_13 {dimension_numbers = #tpu.dot_dimension_numbers<[1], [1], [0], [0], [0, 0, 1, 0], [], []>} : vector<1x32xf32>, vector<128x32xf32>, vector<1x128xf32> -> vector<1x128xf32>
      %c0_14 = arith.constant 0 : index
      %c0_15 = arith.constant 0 : index
      %19 = vector.load %arg4[%c0_14, %c0_15] : memref<1x128xf32, #tpu.memory_space<vmem>>, vector<1x128xf32>
      %20 = math.rsqrt %18 : vector<1x128xf32>
      %21 = arith.mulf %19, %20 : vector<1x128xf32>
      %22 = arith.index_cast %arg0 : i32 to index
      %c0_16 = arith.constant 0 : index
      %c0_17 = arith.constant 0 : index
      %23 = vector.load %arg7[%22, %c0_16, %c0_17] : memref<1x1x128xf32, #tpu.memory_space<vmem>>, vector<1x1x128xf32>
      %24 = vector.shape_cast %23 : vector<1x1x128xf32> to vector<1x128xf32>
      %25 = vector.shape_cast %21 : vector<1x128xf32> to vector<1x1x128xf32>
      tpu.vector_store %arg7[%22, %c0_16, %c0_17], %25 {strides = array<i32>} : memref<1x1x128xf32, #tpu.memory_space<vmem>>, vector<1x1x128xf32>,
    } else {
    }
    %c0 = arith.constant 0 : index
    %c0_1 = arith.constant 0 : index
    %3 = vector.load %arg2[%c0, %c0_1] : memref<8x32xf32, #tpu.memory_space<vmem>>, vector<8x32xf32>
    %c0_2 = arith.constant 0 : index
    %c0_3 = arith.constant 0 : index
    %4 = vector.load %arg3[%c0_2, %c0_3] : memref<128x32xf32, #tpu.memory_space<vmem>>, vector<128x32xf32>
    %cst = arith.constant dense<0.000000e+00> : vector<8x128xf32>
    %5 = tpu.matmul %3, %4, %cst {dimension_numbers = #tpu.dot_dimension_numbers<[1], [1], [0], [0], [0, 0, 1, 0], [], []>} : vector<8x32xf32>, vector<128x32xf32>, vector<8x128xf32> -> vector<8x128xf32>
    %6 = arith.index_cast %arg0 : i32 to index
    %c0_4 = arith.constant 0 : index
    %c0_5 = arith.constant 0 : index
    %7 = vector.load %arg7[%6, %c0_4, %c0_5] : memref<1x1x128xf32, #tpu.memory_space<vmem>>, vector<1x1x128xf32>
    %8 = vector.shape_cast %7 : vector<1x1x128xf32> to vector<1x128xf32>
    %9 = vector.broadcast %8 : vector<1x128xf32> to vector<8x128xf32>
    %10 = arith.mulf %5, %9 : vector<8x128xf32>
    %c0_6 = arith.constant 0 : index
    %c0_7 = arith.constant 0 : index
    %11 = vector.load %arg5[%c0_6, %c0_7] : memref<1x128xf32, #tpu.memory_space<vmem>>, vector<1x128xf32>
    %12 = vector.broadcast %11 : vector<1x128xf32> to vector<8x128xf32>
    %13 = arith.addf %10, %12 : vector<8x128xf32>
    %c0_8 = arith.constant 0 : index
    %c0_9 = arith.constant 0 : index
    %14 = vector.load %arg6[%c0_8, %c0_9] : memref<8x128xf32, #tpu.memory_space<vmem>>, vector<8x128xf32>
    tpu.vector_store %arg6[%c0_8, %c0_9], %13 {strides = array<i32>} : memref<8x128xf32, #tpu.memory_space<vmem>>, vector<8x128xf32>,
    return
  }
  func.func @transform_0(%arg0: i32, %arg1: i32) -> (i32, i32) {
    %c0_i32 = arith.constant 0 : i32
    %c0_i32_0 = arith.constant 0 : i32
    return %arg1, %c0_i32 : i32, i32
  }
  func.func @transform_1(%arg0: i32, %arg1: i32) -> (i32, i32) {
    %c0_i32 = arith.constant 0 : i32
    %c0_i32_0 = arith.constant 0 : i32
    return %arg0, %c0_i32 : i32, i32
  }
  func.func @transform_2(%arg0: i32, %arg1: i32) -> (i32, i32) {
    %c0_i32 = arith.constant 0 : i32
    %c0_i32_0 = arith.constant 0 : i32
    return %c0_i32, %arg0 : i32, i32
  }
  func.func @transform_3(%arg0: i32, %arg1: i32) -> (i32, i32) {
    %c0_i32 = arith.constant 0 : i32
    %c0_i32_0 = arith.constant 0 : i32
    return %c0_i32, %arg0 : i32, i32
  }
  func.func @transform_4(%arg0: i32, %arg1: i32) -> (i32, i32) {
    %c0_i32 = arith.constant 0 : i32
    return %arg1, %arg0 : i32, i32
  }
}

</mosaic_0001>

<llo_original>
// kernel: classifier_layer.1
$region0: #{classifier_layer.1}
  #allocation0 [shape = 'u32[]', space=smem, size = 0x4, offset = 0x4, fixed_abs, tag = 'smem constant byte address 0x4 - core index']
  #allocation1 [shape = 'u32[144,128]{1,0:T(1,128)}', space=vmem, size = 0x12000, scoped, tag = 'internal scratch']
  #allocation2 [shape = 'f32[1,1,128]{2,1,0:T(1,128)}', space=vmem, size = 0x200, scoped, tag = 'scratch operand']
  %s0 = inlined_call_operand.vmem [shape: f32[8,32], index: 0, kind: input, shape index: {}]
  %s1 = inlined_call_operand.vmem [shape: f32[128,32], index: 1, kind: input, shape index: {}]
  %s2 = inlined_call_operand.vmem [shape: f32[1,128], index: 2, kind: input, shape index: {}]
  %s3 = inlined_call_operand.vmem [shape: f32[1,128], index: 3, kind: input, shape index: {}]
  %s4 = inlined_call_operand.hbm [shape: f32[8,128], index: 4, kind: output, shape index: {}]
  %s5 = sld [smem:[#allocation0]]
  $region30: #{classifier_layer.1} parent=0
    _
  %s7 = ssub.s32 1, %s5
  %s8 = scalar_select 0, %s7, %s5
  $region1: #{classifier_layer.1} parent=0
    #allocation3 [shape = 'u8[4096]{0}', space=vmem, size = 0x1000, scoped, tag = 'output window, operand 0, single buffered']
    #allocation4 [shape = 's32[1]{0}', space=sflag, size = 0x4, scoped, tag = 'scoped memory for classifier_layer.1']
    %9 = vsyncpa [#allocation4], 0
    // Predicated region
    $region2: #{classifier_layer.1} parent=1 // pred_check
      _
    $region3: #{classifier_layer.1} parent=1 // pred_check_branch
      %11 = sbr.rel (0) target = $region5
    $region4: #{classifier_layer.1} parent=1 // pred_region
      _
    $region5: #{classifier_layer.1} parent=1 // pred_fallthru
      _
    // Predicated region
    $region6: #{classifier_layer.1} parent=1 // pred_check
      _
    $region7: #{classifier_layer.1} parent=1 // pred_check_branch
      %13 = sbr.rel (0) target = $region9
    $region8: #{classifier_layer.1} parent=1 // pred_region
      _
    $region9: #{classifier_layer.1} parent=1 // pred_fallthru
      _
    // Predicated region
    $region10: #{classifier_layer.1} parent=1 // pred_check
      _
    $region11: #{classifier_layer.1} parent=1 // pred_check_branch
      %15 = sbr.rel (0) target = $region13
    $region12: #{classifier_layer.1} parent=1 // pred_region
      _
    $region13: #{classifier_layer.1} parent=1 // pred_fallthru
      _
    // Predicated region
    $region14: #{classifier_layer.1} parent=1 // pred_check
      _
    $region15: #{classifier_layer.1} parent=1 // pred_check_branch
      %17 = sbr.rel (0) target = $region17
    $region16: #{classifier_layer.1} parent=1 // pred_region
      _
    $region17: #{classifier_layer.1} parent=1 // pred_fallthru
      _
    %p18 = scmp.eq.s32.totalorder 0, 0
    // Predicated region
    $region18: #{classifier_layer.1} parent=1 // pred_check
      %p19 = pneg %p18
    $region19: #{classifier_layer.1} parent=1 // pred_check_branch
      %21 = sbr.rel (%p19) target = $region21
    $region20: #{classifier_layer.1} parent=1 // pred_region
      %v22 = vld [vmem:[%s1] sm:$0xff]
      %v23 = vld [vmem:[%s1 + $0x8] sm:$0xff]
      %v24 = vld [vmem:[%s1 + $0x10] sm:$0xff]
      %v25 = vld [vmem:[%s1 + $0x18] sm:$0xff]
      %v26 = vld [vmem:[%s1 + $0x20] sm:$0xff]
      %v27 = vld [vmem:[%s1 + $0x28] sm:$0xff]
      %v28 = vld [vmem:[%s1 + $0x30] sm:$0xff]
      %v29 = vld [vmem:[%s1 + $0x38] sm:$0xff]
      %v30 = vld [vmem:[%s1 + $0x40] sm:$0xff]
      %v31 = vld [vmem:[%s1 + $0x48] sm:$0xff]
      %v32 = vld [vmem:[%s1 + $0x50] sm:$0xff]
      %v33 = vld [vmem:[%s1 + $0x58] sm:$0xff]
      %v34 = vld [vmem:[%s1 + $0x60] sm:$0xff]
      %v35 = vld [vmem:[%s1 + $0x68] sm:$0xff]
      %v36 = vld [vmem:[%s1 + $0x70] sm:$0xff]
      %v37 = vld [vmem:[%s1 + $0x78] sm:$0xff]
      %v38 = vmul.f32 %v22, %v22
      %v39 = vmul.f32 %v23, %v23
      %v40 = vmul.f32 %v24, %v24
      %v41 = vmul.f32 %v25, %v25
      %v42 = vmul.f32 %v26, %v26
      %v43 = vmul.f32 %v27, %v27
      %v44 = vmul.f32 %v28, %v28
      %v45 = vmul.f32 %v29, %v29
      %v46 = vmul.f32 %v30, %v30
      %v47 = vmul.f32 %v31, %v31
      %v48 = vmul.f32 %v32, %v32
      %v49 = vmul.f32 %v33, %v33
      %v50 = vmul.f32 %v34, %v34
      %v51 = vmul.f32 %v35, %v35
      %v52 = vmul.f32 %v36, %v36
      %v53 = vmul.f32 %v37, %v37
      %vm54 = vcmask 261120
      %v56 = vsel %vm54, 1.0, 0
      %v59 = vsel %vm54, %v38, 0
      %v62 = vsel %vm54, %v39, 0
      %v65 = vsel %vm54, %v40, 0
      %v68 = vsel %vm54, %v41, 0
      %v71 = vsel %vm54, %v42, 0
      %v74 = vsel %vm54, %v43, 0
      %v77 = vsel %vm54, %v44, 0
      %v80 = vsel %vm54, %v45, 0
      %v83 = vsel %vm54, %v46, 0
      %v86 = vsel %vm54, %v47, 0
      %v89 = vsel %vm54, %v48, 0
      %v92 = vsel %vm54, %v49, 0
      %v95 = vsel %vm54, %v50, 0
      %v98 = vsel %vm54, %v51, 0
      %v101 = vsel %vm54, %v52, 0
      %v104 = vsel %vm54, %v53, 0
      %106 = vmatprep.subr.mxu0 0.0
      %107 = vmatpush1.xpose.msra.mxu0 %v104
      %108 = vmatprep.subr.mxu0 0.0
      %109 = vmatpush1.xpose.msra.mxu0 %v101
      %110 = vmatprep.subr.mxu0 0.0
      %111 = vmatpush1.xpose.msra.mxu0 %v98
      %112 = vmatprep.subr.mxu0 0.0
      %113 = vmatpush1.xpose.msra.mxu0 %v95
      %114 = vmatprep.subr.mxu0 0.0
      %115 = vmatpush1.xpose.msra.mxu0 %v92
      %116 = vmatprep.subr.mxu0 0.0
      %117 = vmatpush1.xpose.msra.mxu0 %v89
      %118 = vmatprep.subr.mxu0 0.0
      %119 = vmatpush1.xpose.msra.mxu0 %v86
      %120 = vmatprep.subr.mxu0 0.0
      %121 = vmatpush1.xpose.msra.mxu0 %v83
      %122 = vmatprep.subr.mxu0 0.0
      %123 = vmatpush1.xpose.msra.mxu0 %v80
      %124 = vmatprep.subr.mxu0 0.0
      %125 = vmatpush1.xpose.msra.mxu0 %v77
      %126 = vmatprep.subr.mxu0 0.0
      %127 = vmatpush1.xpose.msra.mxu0 %v74
      %128 = vmatprep.subr.mxu0 0.0
      %129 = vmatpush1.xpose.msra.mxu0 %v71
      %130 = vmatprep.subr.mxu0 0.0
      %131 = vmatpush1.xpose.msra.mxu0 %v68
      %132 = vmatprep.subr.mxu0 0.0
      %133 = vmatpush1.xpose.msra.mxu0 %v65
      %134 = vmatprep.subr.mxu0 0.0
      %135 = vmatpush1.xpose.msra.mxu0 %v62
      %136 = vmatprep.subr.mxu0 0.0
      %137 = vmatpush1.xpose.msra.mxu0 %v59
      %138 = vmatprep.subr.mxu0 0.0
      %139 = vmatpush2.xpose.msra.mxu0 0.0
      %140 = vmatprep.subr.mxu0 0.0
      %141 = vmatpush2.xpose.msra.mxu0 0.0
      %142 = vmatprep.subr.mxu0 0.0
      %143 = vmatpush2.xpose.msra.mxu0 0.0
      %144 = vmatprep.subr.mxu0 0.0
      %145 = vmatpush2.xpose.msra.mxu0 0.0
      %146 = vmatprep.subr.mxu0 0.0
      %147 = vmatpush2.xpose.msra.mxu0 0.0
      %148 = vmatprep.subr.mxu0 0.0
      %149 = vmatpush2.xpose.msra.mxu0 0.0
      %150 = vmatprep.subr.mxu0 0.0
      %151 = vmatpush2.xpose.msra.mxu0 0.0
      %152 = vmatprep.subr.mxu0 0.0
      %153 = vmatpush2.xpose.msra.mxu0 0.0
      %154 = vmatprep.subr.mxu0 0.0
      %155 = vmatpush2.xpose.msra.mxu0 0.0
      %156 = vmatprep.subr.mxu0 0.0
      %157 = vmatpush2.xpose.msra.mxu0 0.0
      %158 = vmatprep.subr.mxu0 0.0
      %159 = vmatpush2.xpose.msra.mxu0 0.0
      %160 = vmatprep.subr.mxu0 0.0
      %161 = vmatpush2.xpose.msra.mxu0 0.0
      %162 = vmatprep.subr.mxu0 0.0
      %163 = vmatpush2.xpose.msra.mxu0 0.0
      %164 = vmatprep.subr.mxu0 0.0
      %165 = vmatpush2.xpose.msra.mxu0 0.0
      %166 = vmatprep.subr.mxu0 0.0
      %167 = vmatpush2.xpose.msra.mxu0 0.0
      %168 = vmatprep.subr.mxu0 0.0
      %169 = vmatpush2.xpose.msra.mxu0 0.0
      %170 = vmatprep.mubr.f32.mxu0 0.0
      %171 = vmatmul.mubr.f32.gmra.mxu0 %v56
      %v172 = vpop.f32.mrf.mxu0
      %v173 = vadd.f32 0.0, %v172
      %v174 = vpop.f32.mrf.mxu0
      %175 = vdwg.mxu0
      %v176 = vld [vmem:[%s2] sm:$0x1]
      %v177 = vrsqrt.pop %v173
      %v178 = vmul.f32 %v176, %v177
      %179 = vst [vmem:[#allocation2] sm:$0x1] %v178
    $region21: #{classifier_layer.1} parent=1 // pred_fallthru
      _
    %v180 = vld [vmem:[%s0] sm:$0xff]
    %v181 = vld [vmem:[%s1] sm:$0xff]
    %v182 = vld [vmem:[%s1 + $0x8] sm:$0xff]
    %v183 = vld [vmem:[%s1 + $0x10] sm:$0xff]
    %v184 = vld [vmem:[%s1 + $0x18] sm:$0xff]
    %v185 = vld [vmem:[%s1 + $0x20] sm:$0xff]
    %v186 = vld [vmem:[%s1 + $0x28] sm:$0xff]
    %v187 = vld [vmem:[%s1 + $0x30] sm:$0xff]
    %v188 = vld [vmem:[%s1 + $0x38] sm:$0xff]
    %v189 = vld [vmem:[%s1 + $0x40] sm:$0xff]
    %v190 = vld [vmem:[%s1 + $0x48] sm:$0xff]
    %v191 = vld [vmem:[%s1 + $0x50] sm:$0xff]
    %v192 = vld [vmem:[%s1 + $0x58] sm:$0xff]
    %v193 = vld [vmem:[%s1 + $0x60] sm:$0xff]
    %v194 = vld [vmem:[%s1 + $0x68] sm:$0xff]
    %v195 = vld [vmem:[%s1 + $0x70] sm:$0xff]
    %v196 = vld [vmem:[%s1 + $0x78] sm:$0xff]
    %vm197 = vcmask 261120
    %v199 = vsel %vm197, %v180, 0
    %v202 = vsel %vm197, %v181, 0
    %v205 = vsel %vm197, %v182, 0
    %v208 = vsel %vm197, %v183, 0
    %v211 = vsel %vm197, %v184, 0
    %v214 = vsel %vm197, %v185, 0
    %v217 = vsel %vm197, %v186, 0
    %v220 = vsel %vm197, %v187, 0
    %v223 = vsel %vm197, %v188, 0
    %v226 = vsel %vm197, %v189, 0
    %v229 = vsel %vm197, %v190, 0
    %v232 = vsel %vm197, %v191, 0
    %v235 = vsel %vm197, %v192, 0
    %v238 = vsel %vm197, %v193, 0
    %v241 = vsel %vm197, %v194, 0
    %v244 = vsel %vm197, %v195, 0
    %v247 = vsel %vm197, %v196, 0
    %249 = vmatprep.subr.mxu0 0.0
    %250 = vmatpush1.xpose.msra.mxu0 %v247
    %251 = vmatprep.subr.mxu0 0.0
    %252 = vmatpush1.xpose.msra.mxu0 %v244
    %253 = vmatprep.subr.mxu0 0.0
    %254 = vmatpush1.xpose.msra.mxu0 %v241
    %255 = vmatprep.subr.mxu0 0.0
    %256 = vmatpush1.xpose.msra.mxu0 %v238
    %257 = vmatprep.subr.mxu0 0.0
    %258 = vmatpush1.xpose.msra.mxu0 %v235
    %259 = vmatprep.subr.mxu0 0.0
    %260 = vmatpush1.xpose.msra.mxu0 %v232
    %261 = vmatprep.subr.mxu0 0.0
    %262 = vmatpush1.xpose.msra.mxu0 %v229
    %263 = vmatprep.subr.mxu0 0.0
    %264 = vmatpush1.xpose.msra.mxu0 %v226
    %265 = vmatprep.subr.mxu0 0.0
    %266 = vmatpush1.xpose.msra.mxu0 %v223
    %267 = vmatprep.subr.mxu0 0.0
    %268 = vmatpush1.xpose.msra.mxu0 %v220
    %269 = vmatprep.subr.mxu0 0.0
    %270 = vmatpush1.xpose.msra.mxu0 %v217
    %271 = vmatprep.subr.mxu0 0.0
    %272 = vmatpush1.xpose.msra.mxu0 %v214
    %273 = vmatprep.subr.mxu0 0.0
    %274 = vmatpush1.xpose.msra.mxu0 %v211
    %275 = vmatprep.subr.mxu0 0.0
    %276 = vmatpush1.xpose.msra.mxu0 %v208
    %277 = vmatprep.subr.mxu0 0.0
    %278 = vmatpush1.xpose.msra.mxu0 %v205
    %279 = vmatprep.subr.mxu0 0.0
    %280 = vmatpush1.xpose.msra.mxu0 %v202
    %281 = vmatprep.subr.mxu0 0.0
    %282 = vmatpush2.xpose.msra.mxu0 0.0
    %283 = vmatprep.subr.mxu0 0.0
    %284 = vmatpush2.xpose.msra.mxu0 0.0
    %285 = vmatprep.subr.mxu0 0.0
    %286 = vmatpush2.xpose.msra.mxu0 0.0
    %287 = vmatprep.subr.mxu0 0.0
    %288 = vmatpush2.xpose.msra.mxu0 0.0
    %289 = vmatprep.subr.mxu0 0.0
    %290 = vmatpush2.xpose.msra.mxu0 0.0
    %291 = vmatprep.subr.mxu0 0.0
    %292 = vmatpush2.xpose.msra.mxu0 0.0
    %293 = vmatprep.subr.mxu0 0.0
    %294 = vmatpush2.xpose.msra.mxu0 0.0
    %295 = vmatprep.subr.mxu0 0.0
    %296 = vmatpush2.xpose.msra.mxu0 0.0
    %297 = vmatprep.subr.mxu0 0.0
    %298 = vmatpush2.xpose.msra.mxu0 0.0
    %299 = vmatprep.subr.mxu0 0.0
    %300 = vmatpush2.xpose.msra.mxu0 0.0
    %301 = vmatprep.subr.mxu0 0.0
    %302 = vmatpush2.xpose.msra.mxu0 0.0
    %303 = vmatprep.subr.mxu0 0.0
    %304 = vmatpush2.xpose.msra.mxu0 0.0
    %305 = vmatprep.subr.mxu0 0.0
    %306 = vmatpush2.xpose.msra.mxu0 0.0
    %307 = vmatprep.subr.mxu0 0.0
    %308 = vmatpush2.xpose.msra.mxu0 0.0
    %309 = vmatprep.subr.mxu0 0.0
    %310 = vmatpush2.xpose.msra.mxu0 0.0
    %311 = vmatprep.subr.mxu0 0.0
    %312 = vmatpush2.xpose.msra.mxu0 0.0
    %313 = vmatprep.mubr.f32.mxu0 0.0
    %314 = vmatmul.mubr.f32.gmra.mxu0 %v199
    %v315 = vpop.f32.mrf.mxu0
    %v316 = vadd.f32 0.0, %v315
    %v317 = vpop.f32.mrf.mxu0
    %318 = vdwg.mxu0
    %v319 = vld [vmem:[#allocation2] sm:$0x1]
    %v321 = vlaneseq
    %v322 = vshrl.u32 %v321, 7
    %v323 = vsub.s32 0, %v322
    %v324 = vrot.slane %v319, %v323
    %v326 = vmul.f32 %v316, %v324
    %v327 = vld [vmem:[%s3] sm:$0x1]
    %v329 = vlaneseq
    %v330 = vshrl.u32 %v329, 7
    %v331 = vsub.s32 0, %v330
    %v332 = vrot.slane %v327, %v331
    %v334 = vadd.f32 %v326, %v332
    %335 = vst [vmem:[#allocation3] sm:$0xff] %v334
    // Predicated region
    $region22: #{classifier_layer.1} parent=1 // pred_check
      _
    $region23: #{classifier_layer.1} parent=1 // pred_check_branch
      %337 = sbr.rel (0) target = $region25
    $region24: #{classifier_layer.1} parent=1 // pred_region
      %s339 = ssub.s32 128, 128
      %340 = vsyncadd [#allocation4], %s339
      %s342 = sshll.u32 [#allocation3], 4
      %s343 = int_to_ptr.vmem [resolvable:$true] %s342
      %345 = dma.vmem_to_hbm [thread:$0]  %s343, 128, %s4, [#allocation4]
    $region25: #{classifier_layer.1} parent=1 // pred_fallthru
      _
    // Predicated region
    $region26: #{classifier_layer.1} parent=1 // pred_check
      _
    $region27: #{classifier_layer.1} parent=1 // pred_check_branch
      %347 = sbr.rel (0) target = $region29
    $region28: #{classifier_layer.1} parent=1 // pred_region
      %348 = dma.done [#allocation4], 128
    $region29: #{classifier_layer.1} parent=1 // pred_fallthru
      _
    %349 = vsyncpa [#allocation4], 1

</llo_original>
